<compile_context>
chip_gen: v6e
topology: v6e:2x2x1
jax: 0.10.0
libtpu: 0.0.40
codegen_flags: <defaults>
</compile_context>

<pallas_src>
import math

import jax
import jax.numpy as jnp
from jax.experimental import pallas as pl
from jax.experimental.pallas import tpu as pltpu

_LANE = 128
_SUBLANE = 8
_MAX_K_TILE_BYTES = 2 * 1024 * 1024  # f32-equivalent k tile (and product intermediate) per step


def _round_up(x, m):
    return ((x + m - 1) // m) * m


def _cattention_kernel(q_ref, k_ref, w_ref, bias_ref, o_ref, r_acc, s_acc):
    # q_ref:    (TB, THW)     query tile (f32), spatially flattened, zero-padded
    # k_ref:    (TB, C, THW)  key tile, native NCHW-flattened layout, native dtype
    # w_ref:    (C, C)        1x1-conv weight^T, pre-scaled by 1/sqrt(hidden)
    # bias_ref: (1, C)        conv bias, pre-scaled by 1/sqrt(hidden)
    # o_ref:    (TB, C)       softmax attention weights
    # r_acc:    (TB, C) f32   scratch: accumulates sum_hw k*q across HW tiles
    # s_acc:    (TB, 1) f32   scratch: accumulates sum_hw q   across HW tiles
    j = pl.program_id(1)

    @pl.when(j == 0)
    def _init():
        r_acc[...] = jnp.zeros_like(r_acc)
        s_acc[...] = jnp.zeros_like(s_acc)

    q = q_ref[...].astype(jnp.float32)                  # (TB, THW)
    k = k_ref[...].astype(jnp.float32)                  # (TB, C, THW)

    # r[b, ci] += sum_hw k[b, ci, hw] * q[b, hw]  (VPU multiply + lane reduce,
    # f32 accumulation).  The intermediate is bounded by the (TB, C, THW) tile
    # because HW is streamed through the grid, keeping vreg/VMEM pressure flat.
    # TODO(synk): move this contraction onto the MXU with a batched
    #             lax.dot_general once batched-dot lowering is confirmed here.
    r_acc[...] += jnp.sum(k * q[:, None, :], axis=-1)
    s_acc[...] += jnp.sum(q, axis=-1, keepdims=True)

    @pl.when(j == pl.num_programs(1) - 1)
    def _finalize():
        # logits = r @ W + (sum q) * bias        (tiny (TB,C)x(C,C) MXU matmul)
        logits = jnp.dot(r_acc[...], w_ref[...], preferred_element_type=jnp.float32)
        logits = logits + s_acc[...] * bias_ref[...]
        # TODO(synk): optional `mask` argument (masked_fill with -1e10 before
        #             softmax) not wired in; the reference call path uses mask=None.
        m = jnp.max(logits, axis=-1, keepdims=True)
        e = jnp.exp(logits - m)
        denom = jnp.sum(e, axis=-1, keepdims=True)
        # approx=False is an exact VPU divide (only approx=True uses the EUP
        # vrcp); kept exact for the 1e-5 tolerance — TB scalars per batch tile,
        # off the critical path.
        att = e * pl.reciprocal(denom, approx=False)
        o_ref[...] = att.astype(o_ref.dtype)


def cattention_forward(q_nchw, k_nchw, v_nchw, conv_w, conv_b, *, hidden_dim):
    """q_nchw: (b, 1, h, w); k_nchw: (b, hidden_dim, h, w); v unused (as in PyTorch)."""
    del v_nchw  # not used by the reference forward
    b, cq, h, w = q_nchw.shape
    _, c, hk, wk = k_nchw.shape
    assert c == hidden_dim and hk == h and wk == w
    assert cq == 1 and cq * hidden_dim == 32, (
        "att.view(b, 32, 1, 1) in the reference requires q channels * hidden_dim == 32")
    hw = h * w
    inv_scale = 1.0 / math.sqrt(hidden_dim)

    # Explicit dtype policy: keep k (the dominant stream) in bf16 if it arrives
    # bf16, else f32; q/W/bias and all accumulation are f32.
    k_dtype = jnp.bfloat16 if k_nchw.dtype == jnp.bfloat16 else jnp.float32

    # ---- tile sizes ---------------------------------------------------------
    # Batch tile: multiple of 8 (f32 sublane), capped at 128 (fills MXU rows for
    # the r @ W matmul and yields enough grid steps to pipeline / megacore-shard).
    tb = min(128, _round_up(b, _SUBLANE))
    # HW tile: multiple of 128 (lane-dense); sized so the f32-equivalent k tile
    # and the in-kernel product intermediate are ~<=2 MiB.  Double-buffered
    # inputs + intermediate + scratch stay well under v5e's 16 MiB scoped-VMEM
    # default (and far under v7x's 64 MiB physical VMEM).
    thw_cap = max(_LANE, (_MAX_K_TILE_BYTES // (tb * c * 4)) // _LANE * _LANE)
    thw = min(_round_up(hw, _LANE), thw_cap)

    b_pad = _round_up(b, tb)
    hw_pad = _round_up(hw, thw)

    # ---- trace-time glue (tiny vs. the k stream) ----------------------------
    # Flatten spatial dims; zero-pad batch/HW to tile multiples (zeros are exact
    # no-ops for the r/s sums; padded batch rows are sliced off below); fold
    # 1/sqrt(hidden) into W/bias so the kernel never scales q.
    q_flat = q_nchw.reshape(b, hw).astype(jnp.float32)
    k_flat = k_nchw.reshape(b, c, hw).astype(k_dtype)      # native (b, C, HW) layout
    if (b_pad, hw_pad) != (b, hw):
        q_flat = jnp.pad(q_flat, ((0, b_pad - b), (0, hw_pad - hw)))
        k_flat = jnp.pad(k_flat, ((0, b_pad - b), (0, 0), (0, hw_pad - hw)))
    w_t = (conv_w[:, :, 0, 0].T * inv_scale).astype(jnp.float32)    # (C_in, C_out)
    bias = (conv_b * inv_scale).reshape(1, c).astype(jnp.float32)   # (1, C_out)

    grid = (b_pad // tb, hw_pad // thw)

    att = pl.pallas_call(
        _cattention_kernel,
        out_shape=jax.ShapeDtypeStruct((b_pad, c), jnp.float32),
        grid_spec=pltpu.PrefetchScalarGridSpec(
            num_scalar_prefetch=0,
            grid=grid,
            in_specs=[
                pl.BlockSpec((tb, thw), lambda i, j: (i, j)),
                # TODO(synk): sweep pipeline_mode=pl.Buffered(3) on the k spec
                #             once profiled on production shapes.
                pl.BlockSpec((tb, c, thw), lambda i, j: (i, 0, j)),
                pl.BlockSpec((c, c), lambda i, j: (0, 0)),
                pl.BlockSpec((1, c), lambda i, j: (0, 0)),
            ],
            out_specs=pl.BlockSpec((tb, c), lambda i, j: (i, 0)),
            scratch_shapes=[
                pltpu.VMEM((tb, c), jnp.float32),   # r accumulator
                pltpu.VMEM((tb, 1), jnp.float32),   # sum(q) accumulator
            ],
        ),
        compiler_params=pltpu.CompilerParams(
            # Batch tiles are independent -> shard across v7x's 2 TensorCores.
            # HW is the reduction axis (scratch accumulator) -> arbitrary, last.
            dimension_semantics=("parallel", "arbitrary")),
    )(q_flat, k_flat, w_t, bias)

    # NOTE: the (TB, 32) output block is a lane-masked store, but it happens
    # once per batch tile (a few KiB) — negligible next to the k stream.
    # att.view(b, 32, 1, 1); drop the batch padding.
    return att[:b].reshape(b, 32, 1, 1)


def _reference_jax(q_nchw, k_nchw, conv_w, conv_b, hidden_dim):
    """Pure-JAX replica of the PyTorch forward for correctness checking."""
    b, c, h, w = k_nchw.shape
    scale = math.sqrt(hidden_dim)
    q = q_nchw.reshape(b, q_nchw.shape[1], h * w)
    kc = jnp.einsum('oi,bihw->bohw', conv_w[:, :, 0, 0], k_nchw) + conv_b[None, :, None, None]
    kc = kc.reshape(b, c, h * w).transpose(0, 2, 1)
    att = jnp.matmul(q / scale, kc)
    att = jax.nn.softmax(att, axis=-1)
    return att.reshape(b, 32, 1, 1)


if __name__ == "__main__":
    hidden_dim = 32
    key = jax.random.PRNGKey(0)
    kq, kk, kv, kw, kb = jax.random.split(key, 5)

    # Conv2d(hidden, hidden, 1) parameters: W (C, C, 1, 1), b (C,)
    conv_w = (jax.random.normal(kw, (hidden_dim, hidden_dim, 1, 1), dtype=jnp.float32)
              * (1.0 / math.sqrt(hidden_dim)))
    conv_b = jax.random.normal(kb, (hidden_dim,), dtype=jnp.float32) * 0.01

    # Two small configs: the canonical one, plus one exercising batch/HW padding.
    for (b, h, w) in [(2, 4, 4), (3, 5, 5)]:
        q = jax.random.normal(kq, (b, 1, h, w), dtype=jnp.float32)
        k = jax.random.normal(kk, (b, hidden_dim, h, w), dtype=jnp.float32)
        v = jax.random.normal(kv, (b, hidden_dim, h, w), dtype=jnp.float32)  # unused, as in torch

        out = cattention_forward(q, k, v, conv_w, conv_b, hidden_dim=hidden_dim)
        out = jax.block_until_ready(out)

        ref = _reference_jax(q, k, conv_w, conv_b, hidden_dim)
        assert out.shape == (b, 32, 1, 1), out.shape
        assert jnp.allclose(out, ref, atol=1e-5, rtol=1e-5), f"mismatch vs reference at b={b}, h={h}, w={w}"

    print("KERNEL_OK")
</pallas_src>

<mosaic_0001>
module attributes {stable_mosaic.version = 11 : i64} {
  func.func @_cattention_kernel(%arg0: i32, %arg1: i32, %arg2: memref<8x128xf32, #tpu.memory_space<vmem>>, %arg3: memref<8x32x128xf32, #tpu.memory_space<vmem>>, %arg4: memref<32x32xf32, #tpu.memory_space<vmem>>, %arg5: memref<1x32xf32, #tpu.memory_space<vmem>>, %arg6: memref<8x32xf32, #tpu.memory_space<vmem>>, %arg7: memref<8x32xf32, #tpu.memory_space<vmem>>, %arg8: memref<8x1xf32, #tpu.memory_space<vmem>>) attributes {dimension_semantics = [#tpu.dimension_semantics<parallel>, #tpu.dimension_semantics<arbitrary>], iteration_bounds = array<i64: 1, 1>, scalar_prefetch = 0 : i64, scratch_operands = 2 : i64, tpu.core_type = #tpu.core_type<tc>, window_params = [{transform_indices = @transform_0, window_bounds = array<i64: 8, 128>}, {transform_indices = @transform_1, window_bounds = array<i64: 8, 32, 128>}, {pipeline_mode = #tpu.pipeline_mode<synchronous>, transform_indices = @transform_2, window_bounds = array<i64: 32, 32>}, {pipeline_mode = #tpu.pipeline_mode<synchronous>, transform_indices = @transform_3, window_bounds = array<i64: 1, 32>}, {transform_indices = @transform_4, window_bounds = array<i64: 8, 32>}]} {
    %c0_i32 = arith.constant 0 : i32
    %0 = arith.cmpi eq, %arg1, %c0_i32 : i32
    %1 = arith.extui %0 : i1 to i32
    %c0_i32_0 = arith.constant 0 : i32
    %2 = arith.cmpi ne, %1, %c0_i32_0 : i32
    scf.if %2 {
      %cst_16 = arith.constant 0.000000e+00 : f32
      %20 = vector.broadcast %cst_16 : f32 to vector<8x32xf32>
      %c0_17 = arith.constant 0 : index
      %c0_18 = arith.constant 0 : index
      %21 = vector.load %arg7[%c0_17, %c0_18] : memref<8x32xf32, #tpu.memory_space<vmem>>, vector<8x32xf32>
      tpu.vector_store %arg7[%c0_17, %c0_18], %20 {strides = array<i32>} : memref<8x32xf32, #tpu.memory_space<vmem>>, vector<8x32xf32>,
      %cst_19 = arith.constant 0.000000e+00 : f32
      %22 = vector.broadcast %cst_19 : f32 to vector<8x1xf32>
      %c0_20 = arith.constant 0 : index
      %c0_21 = arith.constant 0 : index
      %23 = vector.load %arg8[%c0_20, %c0_21] : memref<8x1xf32, #tpu.memory_space<vmem>>, vector<8x1xf32>
      tpu.vector_store %arg8[%c0_20, %c0_21], %22 {strides = array<i32>} : memref<8x1xf32, #tpu.memory_space<vmem>>, vector<8x1xf32>,
    } else {
    }
    %c0 = arith.constant 0 : index
    %c0_1 = arith.constant 0 : index
    %3 = vector.load %arg2[%c0, %c0_1] : memref<8x128xf32, #tpu.memory_space<vmem>>, vector<8x128xf32>
    %c0_2 = arith.constant 0 : index
    %c0_3 = arith.constant 0 : index
    %c0_4 = arith.constant 0 : index
    %4 = vector.load %arg3[%c0_2, %c0_3, %c0_4] : memref<8x32x128xf32, #tpu.memory_space<vmem>>, vector<8x32x128xf32>
    %c0_5 = arith.constant 0 : index
    %c0_6 = arith.constant 0 : index
    %5 = vector.load %arg7[%c0_5, %c0_6] : memref<8x32xf32, #tpu.memory_space<vmem>>, vector<8x32xf32>
    %6 = vector.shape_cast %3 : vector<8x128xf32> to vector<8x1x128xf32>
    %7 = vector.broadcast %6 : vector<8x1x128xf32> to vector<8x32x128xf32>
    %8 = arith.mulf %4, %7 : vector<8x32x128xf32>
    %cst = arith.constant dense<0.000000e+00> : vector<8x32xf32>
    %9 = vector.multi_reduction <add>, %8, %cst [2] : vector<8x32x128xf32> to vector<8x32xf32>
    %10 = arith.addf %5, %9 : vector<8x32xf32>
    %c0_7 = arith.constant 0 : index
    %c0_8 = arith.constant 0 : index
    %11 = vector.load %arg7[%c0_7, %c0_8] : memref<8x32xf32, #tpu.memory_space<vmem>>, vector<8x32xf32>
    tpu.vector_store %arg7[%c0_7, %c0_8], %10 {strides = array<i32>} : memref<8x32xf32, #tpu.memory_space<vmem>>, vector<8x32xf32>,
    %c0_9 = arith.constant 0 : index
    %c0_10 = arith.constant 0 : index
    %12 = vector.load %arg8[%c0_9, %c0_10] : memref<8x1xf32, #tpu.memory_space<vmem>>, vector<8x1xf32>
    %cst_11 = arith.constant dense<0.000000e+00> : vector<8xf32>
    %13 = vector.multi_reduction <add>, %3, %cst_11 [1] : vector<8x128xf32> to vector<8xf32>
    %14 = vector.shape_cast %13 : vector<8xf32> to vector<8x1xf32>
    %15 = arith.addf %12, %14 : vector<8x1xf32>
    %c0_12 = arith.constant 0 : index
    %c0_13 = arith.constant 0 : index
    %16 = vector.load %arg8[%c0_12, %c0_13] : memref<8x1xf32, #tpu.memory_space<vmem>>, vector<8x1xf32>
    tpu.vector_store %arg8[%c0_12, %c0_13], %15 {strides = array<i32>} : memref<8x1xf32, #tpu.memory_space<vmem>>, vector<8x1xf32>,
    %c0_i32_14 = arith.constant 0 : i32
    %17 = arith.cmpi eq, %arg1, %c0_i32_14 : i32
    %18 = arith.extui %17 : i1 to i32
    %c0_i32_15 = arith.constant 0 : i32
    %19 = arith.cmpi ne, %18, %c0_i32_15 : i32
    scf.if %19 {
      %c0_16 = arith.constant 0 : index
      %c0_17 = arith.constant 0 : index
      %20 = vector.load %arg7[%c0_16, %c0_17] : memref<8x32xf32, #tpu.memory_space<vmem>>, vector<8x32xf32>
      %c0_18 = arith.constant 0 : index
      %c0_19 = arith.constant 0 : index
      %21 = vector.load %arg4[%c0_18, %c0_19] : memref<32x32xf32, #tpu.memory_space<vmem>>, vector<32x32xf32>
      %cst_20 = arith.constant dense<0.000000e+00> : vector<8x32xf32>
      %22 = tpu.matmul %20, %21, %cst_20 {dimension_numbers = #tpu.dot_dimension_numbers<[1], [0], [0], [1], [0, 0, 1, 1], [], []>} : vector<8x32xf32>, vector<32x32xf32>, vector<8x32xf32> -> vector<8x32xf32>
      %c0_21 = arith.constant 0 : index
      %c0_22 = arith.constant 0 : index
      %23 = vector.load %arg8[%c0_21, %c0_22] : memref<8x1xf32, #tpu.memory_space<vmem>>, vector<8x1xf32>
      %c0_23 = arith.constant 0 : index
      %c0_24 = arith.constant 0 : index
      %24 = vector.load %arg5[%c0_23, %c0_24] : memref<1x32xf32, #tpu.memory_space<vmem>>, vector<1x32xf32>
      %25 = vector.broadcast %23 : vector<8x1xf32> to vector<8x32xf32>
      %26 = vector.broadcast %24 : vector<1x32xf32> to vector<8x32xf32>
      %27 = arith.mulf %25, %26 : vector<8x32xf32>
      %28 = arith.addf %22, %27 : vector<8x32xf32>
      %cst_25 = arith.constant dense<0xFF800000> : vector<8xf32>
      %29 = vector.multi_reduction <maximumf>, %28, %cst_25 [1] : vector<8x32xf32> to vector<8xf32>
      %30 = vector.shape_cast %29 : vector<8xf32> to vector<8x1xf32>
      %31 = vector.broadcast %30 : vector<8x1xf32> to vector<8x32xf32>
      %32 = arith.subf %28, %31 : vector<8x32xf32>
      %33 = math.exp %32 : vector<8x32xf32>
      %cst_26 = arith.constant dense<0.000000e+00> : vector<8xf32>
      %34 = vector.multi_reduction <add>, %33, %cst_26 [1] : vector<8x32xf32> to vector<8xf32>
      %35 = vector.shape_cast %34 : vector<8xf32> to vector<8x1xf32>
      %36 = tpu.reciprocal %35 : vector<8x1xf32> -> vector<8x1xf32>
      %37 = vector.broadcast %36 : vector<8x1xf32> to vector<8x32xf32>
      %38 = arith.mulf %33, %37 : vector<8x32xf32>
      %c0_27 = arith.constant 0 : index
      %c0_28 = arith.constant 0 : index
      %39 = vector.load %arg6[%c0_27, %c0_28] : memref<8x32xf32, #tpu.memory_space<vmem>>, vector<8x32xf32>
      tpu.vector_store %arg6[%c0_27, %c0_28], %38 {strides = array<i32>} : memref<8x32xf32, #tpu.memory_space<vmem>>, vector<8x32xf32>,
    } else {
    }
    return
  }
  func.func @transform_0(%arg0: i32, %arg1: i32) -> (i32, i32) {
    %c0_i32 = arith.constant 0 : i32
    return %arg0, %arg1 : i32, i32
  }
  func.func @transform_1(%arg0: i32, %arg1: i32) -> (i32, i32, i32) {
    %c0_i32 = arith.constant 0 : i32
    %c0_i32_0 = arith.constant 0 : i32
    return %arg0, %c0_i32, %arg1 : i32, i32, i32
  }
  func.func @transform_2(%arg0: i32, %arg1: i32) -> (i32, i32) {
    %c0_i32 = arith.constant 0 : i32
    %c0_i32_0 = arith.constant 0 : i32
    %c0_i32_1 = arith.constant 0 : i32
    return %c0_i32, %c0_i32_0 : i32, i32
  }
  func.func @transform_3(%arg0: i32, %arg1: i32) -> (i32, i32) {
    %c0_i32 = arith.constant 0 : i32
    %c0_i32_0 = arith.constant 0 : i32
    %c0_i32_1 = arith.constant 0 : i32
    return %c0_i32, %c0_i32_0 : i32, i32
  }
  func.func @transform_4(%arg0: i32, %arg1: i32) -> (i32, i32) {
    %c0_i32 = arith.constant 0 : i32
    %c0_i32_0 = arith.constant 0 : i32
    return %arg0, %c0_i32 : i32, i32
  }
}

</mosaic_0001>

<llo_original>
// kernel: tpu_custom_call.1
$region0: #{tpu_custom_call.1}
  #allocation0 [shape = 'u32[]', space=smem, size = 0x4, offset = 0x4, fixed_abs, tag = 'smem constant byte address 0x4 - core index']
  #allocation1 [shape = 'u32[144,128]{1,0:T(1,128)}', space=vmem, size = 0x12000, scoped, tag = 'internal scratch']
  #allocation2 [shape = 'f32[8,32]{1,0:T(8,128)}', space=vmem, size = 0x1000, scoped, tag = 'scratch operand']
  #allocation3 [shape = 'f32[8,1]{1,0:T(8,128)}', space=vmem, size = 0x1000, scoped, tag = 'scratch operand']
  %s0 = inlined_call_operand.hbm [shape: f32[8,128], index: 0, kind: input, shape index: {}]
  %s1 = inlined_call_operand.hbm [shape: f32[8,32,128], index: 1, kind: input, shape index: {}]
  %s2 = inlined_call_operand.hbm [shape: f32[32,32], index: 2, kind: input, shape index: {}]
  %s3 = inlined_call_operand.vmem [shape: f32[1,32], index: 3, kind: input, shape index: {}]
  %s4 = inlined_call_operand.hbm [shape: f32[8,32], index: 4, kind: output, shape index: {}]
  %s5 = sld [smem:[#allocation0]]
  $region46: #{tpu_custom_call.1} parent=0
    _
  %s7 = ssub.s32 1, %s5
  %s8 = scalar_select 0, %s7, %s5
  $region1: #{tpu_custom_call.1} parent=0
    #allocation4 [shape = 'u8[4096]{0}', space=vmem, size = 0x1000, scoped, tag = 'input window, operand 0, single buffered']
    #allocation5 [shape = 's32[1]{0}', space=sflag, size = 0x4, scoped, tag = 'scoped memory for tpu_custom_call.1']
    #allocation6 [shape = 's32[1]{0}', space=sflag, size = 0x4, scoped, tag = 'scoped memory for tpu_custom_call.1']
    #allocation7 [shape = 'u8[131072]{0}', space=vmem, size = 0x20000, scoped, tag = 'input window, operand 1, single buffered']
    #allocation8 [shape = 's32[1]{0}', space=sflag, size = 0x4, scoped, tag = 'scoped memory for tpu_custom_call.1']
    #allocation9 [shape = 'u8[16384]{0}', space=vmem, size = 0x4000, scoped, tag = 'input window, operand 2, single buffered']
    #allocation10 [shape = 'u8[4096]{0}', space=vmem, size = 0x1000, scoped, tag = 'output window, operand 0, single buffered']
    %9 = vsyncpa [#allocation5], 0
    %10 = vsyncpa [#allocation8], 0
    %11 = vsyncpa [#allocation6], 0
    // Predicated region
    $region2: #{tpu_custom_call.1} parent=1 // pred_check
      _
    $region3: #{tpu_custom_call.1} parent=1 // pred_check_branch
      %13 = sbr.rel (0) target = $region5
    $region4: #{tpu_custom_call.1} parent=1 // pred_region
      %s15 = ssub.s32 128, 128
      %16 = vsyncadd [#allocation5], %s15
      %s18 = sshll.u32 [#allocation4], 4
      %s19 = int_to_ptr.vmem [resolvable:$true] %s18
      %21 = dma.hbm_to_vmem [thread:$0]  %s0, 128, %s19, [#allocation5]
    $region5: #{tpu_custom_call.1} parent=1 // pred_fallthru
      _
    // Predicated region
    $region6: #{tpu_custom_call.1} parent=1 // pred_check
      _
    $region7: #{tpu_custom_call.1} parent=1 // pred_check_branch
      %23 = sbr.rel (0) target = $region9
    $region8: #{tpu_custom_call.1} parent=1 // pred_region
      %s25 = ssub.s32 4096, 4096
      %26 = vsyncadd [#allocation8], %s25
      %s27 = sshll.u32 [#allocation7], 4
      %s28 = int_to_ptr.vmem [resolvable:$true] %s27
      %33 = dma.hbm_to_vmem [thread:$0]  %s1, 4096, %s28, [#allocation8], 128, 128, 8
    $region9: #{tpu_custom_call.1} parent=1 // pred_fallthru
      _
    // Predicated region
    $region10: #{tpu_custom_call.1} parent=1 // pred_check
      _
    $region11: #{tpu_custom_call.1} parent=1 // pred_check_branch
      %35 = sbr.rel (0) target = $region13
    $region12: #{tpu_custom_call.1} parent=1 // pred_region
      %s37 = ssub.s32 512, 512
      %38 = vsyncadd [#allocation8], %s37
      %s39 = sshll.u32 [#allocation9], 4
      %s40 = int_to_ptr.vmem [resolvable:$true] %s39
      %45 = dma.hbm_to_vmem [thread:$0]  %s2, 512, %s40, [#allocation8], 128, 128, 8
    $region13: #{tpu_custom_call.1} parent=1 // pred_fallthru
      _
    // Predicated region
    $region14: #{tpu_custom_call.1} parent=1 // pred_check
      _
    $region15: #{tpu_custom_call.1} parent=1 // pred_check_branch
      %47 = sbr.rel (0) target = $region17
    $region16: #{tpu_custom_call.1} parent=1 // pred_region
      _
    $region17: #{tpu_custom_call.1} parent=1 // pred_fallthru
      _
    // Predicated region
    $region18: #{tpu_custom_call.1} parent=1 // pred_check
      _
    $region19: #{tpu_custom_call.1} parent=1 // pred_check_branch
      %49 = sbr.rel (0) target = $region21
    $region20: #{tpu_custom_call.1} parent=1 // pred_region
      %50 = dma.done [#allocation5], 128
    $region21: #{tpu_custom_call.1} parent=1 // pred_fallthru
      _
    // Predicated region
    $region22: #{tpu_custom_call.1} parent=1 // pred_check
      _
    $region23: #{tpu_custom_call.1} parent=1 // pred_check_branch
      %52 = sbr.rel (0) target = $region25
    $region24: #{tpu_custom_call.1} parent=1 // pred_region
      %53 = dma.done [#allocation8], 4096
    $region25: #{tpu_custom_call.1} parent=1 // pred_fallthru
      _
    // Predicated region
    $region26: #{tpu_custom_call.1} parent=1 // pred_check
      _
    $region27: #{tpu_custom_call.1} parent=1 // pred_check_branch
      %55 = sbr.rel (0) target = $region29
    $region28: #{tpu_custom_call.1} parent=1 // pred_region
      %56 = dma.done [#allocation8], 512
    $region29: #{tpu_custom_call.1} parent=1 // pred_fallthru
      _
    %p57 = scmp.eq.s32.totalorder 0, 0
    // Predicated region
    $region30: #{tpu_custom_call.1} parent=1 // pred_check
      %p58 = pneg %p57
    $region31: #{tpu_custom_call.1} parent=1 // pred_check_branch
      %60 = sbr.rel (%p58) target = $region33
    $region32: #{tpu_custom_call.1} parent=1 // pred_region
      %vm61 = vcmask 261120
      %62 = vst.msk [vmem:[#allocation2] sm:$0xff] %vm61, 0.0
      %vm63 = vcmask 7168
      %64 = vst.msk [vmem:[#allocation3] sm:$0xff] %vm63, 0.0
    $region33: #{tpu_custom_call.1} parent=1 // pred_fallthru
      _
    %v65 = vld [vmem:[#allocation4] sm:$0xff]
    %v66 = vld [vmem:[#allocation7] sm:$0xff]
    %v67 = vld [vmem:[#allocation7 + $0x8] sm:$0xff]
    %v68 = vld [vmem:[#allocation7 + $0x10] sm:$0xff]
    %v69 = vld [vmem:[#allocation7 + $0x18] sm:$0xff]
    %v70 = vld [vmem:[#allocation7 + $0x20] sm:$0xff]
    %v71 = vld [vmem:[#allocation7 + $0x28] sm:$0xff]
    %v72 = vld [vmem:[#allocation7 + $0x30] sm:$0xff]
    %v73 = vld [vmem:[#allocation7 + $0x38] sm:$0xff]
    %v74 = vld [vmem:[#allocation7 + $0x40] sm:$0xff]
    %v75 = vld [vmem:[#allocation7 + $0x48] sm:$0xff]
    %v76 = vld [vmem:[#allocation7 + $0x50] sm:$0xff]
    %v77 = vld [vmem:[#allocation7 + $0x58] sm:$0xff]
    %v78 = vld [vmem:[#allocation7 + $0x60] sm:$0xff]
    %v79 = vld [vmem:[#allocation7 + $0x68] sm:$0xff]
    %v80 = vld [vmem:[#allocation7 + $0x70] sm:$0xff]
    %v81 = vld [vmem:[#allocation7 + $0x78] sm:$0xff]
    %v82 = vld [vmem:[#allocation7 + $0x80] sm:$0xff]
    %v83 = vld [vmem:[#allocation7 + $0x88] sm:$0xff]
    %v84 = vld [vmem:[#allocation7 + $0x90] sm:$0xff]
    %v85 = vld [vmem:[#allocation7 + $0x98] sm:$0xff]
    %v86 = vld [vmem:[#allocation7 + $0xa0] sm:$0xff]
    %v87 = vld [vmem:[#allocation7 + $0xa8] sm:$0xff]
    %v88 = vld [vmem:[#allocation7 + $0xb0] sm:$0xff]
    %v89 = vld [vmem:[#allocation7 + $0xb8] sm:$0xff]
    %v90 = vld [vmem:[#allocation7 + $0xc0] sm:$0xff]
    %v91 = vld [vmem:[#allocation7 + $0xc8] sm:$0xff]
    %v92 = vld [vmem:[#allocation7 + $0xd0] sm:$0xff]
    %v93 = vld [vmem:[#allocation7 + $0xd8] sm:$0xff]
    %v94 = vld [vmem:[#allocation7 + $0xe0] sm:$0xff]
    %v95 = vld [vmem:[#allocation7 + $0xe8] sm:$0xff]
    %v96 = vld [vmem:[#allocation7 + $0xf0] sm:$0xff]
    %v97 = vld [vmem:[#allocation7 + $0xf8] sm:$0xff]
    %v98 = vld [vmem:[#allocation2] sm:$0xff]
    %v100 = vcombine.high %v65, %v65
    %v102 = vunpack.c.l.s4 1966171168
    %v103 = vunpack.c.0.s8 %v102
    %v104 = vlaneseq
    %v105 = vshrl.u32 %v104, 7
    %v106 = vsub.s32 %v103, %v105
    %v107 = vrot.slane %v65, %v106
    %v109 = vunpack.c.l.s4 1966171168
    %v110 = vunpack.c.0.s8 %v109
    %v111 = vlaneseq
    %v112 = vshrl.u32 %v111, 7
    %v113 = vsub.s32 %v110, %v112
    %v114 = vrot.slane %v100, %v113
    %v115 = vcombine.high %v107, %v107
    %v116 = vcombine.high %v114, %v114
    %v118 = vunpack.c.l.s4 1966171168
    %v119 = vunpack.c.0.s8 %v118
    %v120 = vlaneseq
    %v121 = vshrl.u32 %v120, 7
    %v122 = vsub.s32 %v119, %v121
    %v123 = vrot.slane %v107, %v122
    %v125 = vunpack.c.l.s4 1966171168
    %v126 = vunpack.c.0.s8 %v125
    %v127 = vlaneseq
    %v128 = vshrl.u32 %v127, 7
    %v129 = vsub.s32 %v126, %v128
    %v130 = vrot.slane %v114, %v129
    %v132 = vunpack.c.l.s4 1966171168
    %v133 = vunpack.c.0.s8 %v132
    %v134 = vlaneseq
    %v135 = vshrl.u32 %v134, 7
    %v136 = vsub.s32 %v133, %v135
    %v137 = vrot.slane %v115, %v136
    %v139 = vunpack.c.l.s4 1966171168
    %v140 = vunpack.c.0.s8 %v139
    %v141 = vlaneseq
    %v142 = vshrl.u32 %v141, 7
    %v143 = vsub.s32 %v140, %v142
    %v144 = vrot.slane %v116, %v143
    %v145 = vcombine.high %v123, %v123
    %v146 = vcombine.high %v130, %v130
    %v147 = vcombine.high %v137, %v137
    %v148 = vcombine.high %v144, %v144
    %v149 = vlaneseq
    %v150 = vshrl.u32 %v149, 7
    %v151 = vsub.s32 0, %v150
    %v152 = vrot.slane %v123, %v151
    %v153 = vlaneseq
    %v154 = vshrl.u32 %v153, 7
    %v155 = vsub.s32 0, %v154
    %v156 = vrot.slane %v137, %v155
    %v157 = vlaneseq
    %v158 = vshrl.u32 %v157, 7
    %v159 = vsub.s32 0, %v158
    %v160 = vrot.slane %v145, %v159
    %v161 = vlaneseq
    %v162 = vshrl.u32 %v161, 7
    %v163 = vsub.s32 0, %v162
    %v164 = vrot.slane %v147, %v163
    %v165 = vlaneseq
    %v166 = vshrl.u32 %v165, 7
    %v167 = vsub.s32 0, %v166
    %v168 = vrot.slane %v130, %v167
    %v169 = vlaneseq
    %v170 = vshrl.u32 %v169, 7
    %v171 = vsub.s32 0, %v170
    %v172 = vrot.slane %v144, %v171
    %v173 = vlaneseq
    %v174 = vshrl.u32 %v173, 7
    %v175 = vsub.s32 0, %v174
    %v176 = vrot.slane %v146, %v175
    %v177 = vlaneseq
    %v178 = vshrl.u32 %v177, 7
    %v179 = vsub.s32 0, %v178
    %v180 = vrot.slane %v148, %v179
    %v189 = vmul.f32 %v66, %v152
    %v190 = vmul.f32 %v67, %v152
    %v191 = vmul.f32 %v68, %v152
    %v192 = vmul.f32 %v69, %v152
    %v193 = vmul.f32 %v70, %v156
    %v194 = vmul.f32 %v71, %v156
    %v195 = vmul.f32 %v72, %v156
    %v196 = vmul.f32 %v73, %v156
    %v197 = vmul.f32 %v74, %v160
    %v198 = vmul.f32 %v75, %v160
    %v199 = vmul.f32 %v76, %v160
    %v200 = vmul.f32 %v77, %v160
    %v201 = vmul.f32 %v78, %v164
    %v202 = vmul.f32 %v79, %v164
    %v203 = vmul.f32 %v80, %v164
    %v204 = vmul.f32 %v81, %v164
    %v205 = vmul.f32 %v82, %v168
    %v206 = vmul.f32 %v83, %v168
    %v207 = vmul.f32 %v84, %v168
    %v208 = vmul.f32 %v85, %v168
    %v209 = vmul.f32 %v86, %v172
    %v210 = vmul.f32 %v87, %v172
    %v211 = vmul.f32 %v88, %v172
    %v212 = vmul.f32 %v89, %v172
    %v213 = vmul.f32 %v90, %v176
    %v214 = vmul.f32 %v91, %v176
    %v215 = vmul.f32 %v92, %v176
    %v216 = vmul.f32 %v93, %v176
    %v217 = vmul.f32 %v94, %v180
    %v218 = vmul.f32 %v95, %v180
    %v219 = vmul.f32 %v96, %v180
    %v220 = vmul.f32 %v97, %v180
    %221 = vadd.xlane.f32.xlu0 %v189
    %v222 = vpop.xlane.xlu0 %221
    %223 = vadd.xlane.f32.xlu0 %v190
    %v224 = vpop.xlane.xlu0 %223
    %225 = vadd.xlane.f32.xlu0 %v191
    %v226 = vpop.xlane.xlu0 %225
    %227 = vadd.xlane.f32.xlu0 %v192
    %v228 = vpop.xlane.xlu0 %227
    %229 = vadd.xlane.f32.xlu0 %v193
    %v230 = vpop.xlane.xlu0 %229
    %231 = vadd.xlane.f32.xlu0 %v194
    %v232 = vpop.xlane.xlu0 %231
    %233 = vadd.xlane.f32.xlu0 %v195
    %v234 = vpop.xlane.xlu0 %233
    %235 = vadd.xlane.f32.xlu0 %v196
    %v236 = vpop.xlane.xlu0 %235
    %237 = vadd.xlane.f32.xlu0 %v197
    %v238 = vpop.xlane.xlu0 %237
    %239 = vadd.xlane.f32.xlu0 %v198
    %v240 = vpop.xlane.xlu0 %239
    %241 = vadd.xlane.f32.xlu0 %v199
    %v242 = vpop.xlane.xlu0 %241
    %243 = vadd.xlane.f32.xlu0 %v200
    %v244 = vpop.xlane.xlu0 %243
    %245 = vadd.xlane.f32.xlu0 %v201
    %v246 = vpop.xlane.xlu0 %245
    %247 = vadd.xlane.f32.xlu0 %v202
    %v248 = vpop.xlane.xlu0 %247
    %249 = vadd.xlane.f32.xlu0 %v203
    %v250 = vpop.xlane.xlu0 %249
    %251 = vadd.xlane.f32.xlu0 %v204
    %v252 = vpop.xlane.xlu0 %251
    %253 = vadd.xlane.f32.xlu0 %v205
    %v254 = vpop.xlane.xlu0 %253
    %255 = vadd.xlane.f32.xlu0 %v206
    %v256 = vpop.xlane.xlu0 %255
    %257 = vadd.xlane.f32.xlu0 %v207
    %v258 = vpop.xlane.xlu0 %257
    %259 = vadd.xlane.f32.xlu0 %v208
    %v260 = vpop.xlane.xlu0 %259
    %261 = vadd.xlane.f32.xlu0 %v209
    %v262 = vpop.xlane.xlu0 %261
    %263 = vadd.xlane.f32.xlu0 %v210
    %v264 = vpop.xlane.xlu0 %263
    %265 = vadd.xlane.f32.xlu0 %v211
    %v266 = vpop.xlane.xlu0 %265
    %267 = vadd.xlane.f32.xlu0 %v212
    %v268 = vpop.xlane.xlu0 %267
    %269 = vadd.xlane.f32.xlu0 %v213
    %v270 = vpop.xlane.xlu0 %269
    %271 = vadd.xlane.f32.xlu0 %v214
    %v272 = vpop.xlane.xlu0 %271
    %273 = vadd.xlane.f32.xlu0 %v215
    %v274 = vpop.xlane.xlu0 %273
    %275 = vadd.xlane.f32.xlu0 %v216
    %v276 = vpop.xlane.xlu0 %275
    %277 = vadd.xlane.f32.xlu0 %v217
    %v278 = vpop.xlane.xlu0 %277
    %279 = vadd.xlane.f32.xlu0 %v218
    %v280 = vpop.xlane.xlu0 %279
    %281 = vadd.xlane.f32.xlu0 %v219
    %v282 = vpop.xlane.xlu0 %281
    %283 = vadd.xlane.f32.xlu0 %v220
    %v284 = vpop.xlane.xlu0 %283
    %v317 = vlaneseq
    %v318 = vand.u32 %v317, 127
    %v319 = vlaneseq
    %v320 = vshrl.u32 %v319, 7
    %v321 = vsub.s32 %v318, %v320
    %v322 = vrot.slane %v222, %v321
    %v323 = vadd.s32 %v318, 4294967288
    %v324 = vlaneseq
    %v325 = vshrl.u32 %v324, 7
    %v326 = vsub.s32 %v323, %v325
    %v327 = vrot.slane %v224, %v326
    %vm328 = vcmask 130112
    %v329 = vsel %vm328, %v327, %v322
    %v330 = vadd.s32 %v318, 4294967280
    %v331 = vlaneseq
    %v332 = vshrl.u32 %v331, 7
    %v333 = vsub.s32 %v330, %v332
    %v334 = vrot.slane %v226, %v333
    %vm335 = vcmask 195712
    %v336 = vsel %vm335, %v334, %v329
    %v337 = vadd.s32 %v318, 4294967272
    %v338 = vlaneseq
    %v339 = vshrl.u32 %v338, 7
    %v340 = vsub.s32 %v337, %v339
    %v341 = vrot.slane %v228, %v340
    %vm342 = vcmask 261312
    %v343 = vsel %vm342, %v341, %v336
    %v344 = vlaneseq
    %v345 = vshrl.u32 %v344, 7
    %v346 = vsub.s32 %v318, %v345
    %v347 = vrot.slane %v230, %v346
    %v348 = vlaneseq
    %v349 = vshrl.u32 %v348, 7
    %v350 = vsub.s32 %v323, %v349
    %v351 = vrot.slane %v232, %v350
    %v352 = vsel %vm328, %v351, %v347
    %v353 = vlaneseq
    %v354 = vshrl.u32 %v353, 7
    %v355 = vsub.s32 %v330, %v354
    %v356 = vrot.slane %v234, %v355
    %v357 = vsel %vm335, %v356, %v352
    %v358 = vlaneseq
    %v359 = vshrl.u32 %v358, 7
    %v360 = vsub.s32 %v337, %v359
    %v361 = vrot.slane %v236, %v360
    %v362 = vsel %vm342, %v361, %v357
    %v363 = vlaneseq
    %v364 = vshrl.u32 %v363, 7
    %v365 = vsub.s32 %v318, %v364
    %v366 = vrot.slane %v238, %v365
    %v367 = vlaneseq
    %v368 = vshrl.u32 %v367, 7
    %v369 = vsub.s32 %v323, %v368
    %v370 = vrot.slane %v240, %v369
    %v371 = vsel %vm328, %v370, %v366
    %v372 = vlaneseq
    %v373 = vshrl.u32 %v372, 7
    %v374 = vsub.s32 %v330, %v373
    %v375 = vrot.slane %v242, %v374
    %v376 = vsel %vm335, %v375, %v371
    %v377 = vlaneseq
    %v378 = vshrl.u32 %v377, 7
    %v379 = vsub.s32 %v337, %v378
    %v380 = vrot.slane %v244, %v379
    %v381 = vsel %vm342, %v380, %v376
    %v382 = vlaneseq
    %v383 = vshrl.u32 %v382, 7
    %v384 = vsub.s32 %v318, %v383
    %v385 = vrot.slane %v246, %v384
    %v386 = vlaneseq
    %v387 = vshrl.u32 %v386, 7
    %v388 = vsub.s32 %v323, %v387
    %v389 = vrot.slane %v248, %v388
    %v390 = vsel %vm328, %v389, %v385
    %v391 = vlaneseq
    %v392 = vshrl.u32 %v391, 7
    %v393 = vsub.s32 %v330, %v392
    %v394 = vrot.slane %v250, %v393
    %v395 = vsel %vm335, %v394, %v390
    %v396 = vlaneseq
    %v397 = vshrl.u32 %v396, 7
    %v398 = vsub.s32 %v337, %v397
    %v399 = vrot.slane %v252, %v398
    %v400 = vsel %vm342, %v399, %v395
    %v401 = vlaneseq
    %v402 = vshrl.u32 %v401, 7
    %v403 = vsub.s32 %v318, %v402
    %v404 = vrot.slane %v254, %v403
    %v405 = vlaneseq
    %v406 = vshrl.u32 %v405, 7
    %v407 = vsub.s32 %v323, %v406
    %v408 = vrot.slane %v256, %v407
    %v409 = vsel %vm328, %v408, %v404
    %v410 = vlaneseq
    %v411 = vshrl.u32 %v410, 7
    %v412 = vsub.s32 %v330, %v411
    %v413 = vrot.slane %v258, %v412
    %v414 = vsel %vm335, %v413, %v409
    %v415 = vlaneseq
    %v416 = vshrl.u32 %v415, 7
    %v417 = vsub.s32 %v337, %v416
    %v418 = vrot.slane %v260, %v417
    %v419 = vsel %vm342, %v418, %v414
    %v420 = vlaneseq
    %v421 = vshrl.u32 %v420, 7
    %v422 = vsub.s32 %v318, %v421
    %v423 = vrot.slane %v262, %v422
    %v424 = vlaneseq
    %v425 = vshrl.u32 %v424, 7
    %v426 = vsub.s32 %v323, %v425
    %v427 = vrot.slane %v264, %v426
    %v428 = vsel %vm328, %v427, %v423
    %v429 = vlaneseq
    %v430 = vshrl.u32 %v429, 7
    %v431 = vsub.s32 %v330, %v430
    %v432 = vrot.slane %v266, %v431
    %v433 = vsel %vm335, %v432, %v428
    %v434 = vlaneseq
    %v435 = vshrl.u32 %v434, 7
    %v436 = vsub.s32 %v337, %v435
    %v437 = vrot.slane %v268, %v436
    %v438 = vsel %vm342, %v437, %v433
    %v439 = vlaneseq
    %v440 = vshrl.u32 %v439, 7
    %v441 = vsub.s32 %v318, %v440
    %v442 = vrot.slane %v270, %v441
    %v443 = vlaneseq
    %v444 = vshrl.u32 %v443, 7
    %v445 = vsub.s32 %v323, %v444
    %v446 = vrot.slane %v272, %v445
    %v447 = vsel %vm328, %v446, %v442
    %v448 = vlaneseq
    %v449 = vshrl.u32 %v448, 7
    %v450 = vsub.s32 %v330, %v449
    %v451 = vrot.slane %v274, %v450
    %v452 = vsel %vm335, %v451, %v447
    %v453 = vlaneseq
    %v454 = vshrl.u32 %v453, 7
    %v455 = vsub.s32 %v337, %v454
    %v456 = vrot.slane %v276, %v455
    %v457 = vsel %vm342, %v456, %v452
    %v458 = vlaneseq
    %v459 = vshrl.u32 %v458, 7
    %v460 = vsub.s32 %v318, %v459
    %v461 = vrot.slane %v278, %v460
    %v462 = vlaneseq
    %v463 = vshrl.u32 %v462, 7
    %v464 = vsub.s32 %v323, %v463
    %v465 = vrot.slane %v280, %v464
    %v466 = vsel %vm328, %v465, %v461
    %v467 = vlaneseq
    %v468 = vshrl.u32 %v467, 7
    %v469 = vsub.s32 %v330, %v468
    %v470 = vrot.slane %v282, %v469
    %v471 = vsel %vm335, %v470, %v466
    %v472 = vlaneseq
    %v473 = vshrl.u32 %v472, 7
    %v474 = vsub.s32 %v337, %v473
    %v475 = vrot.slane %v284, %v474
    %v476 = vsel %vm342, %v475, %v471
    %vm477 = vcmask 1041409
    %v478 = vsel %vm477, %v362, %v343
    %vm479 = vcmask 1042434
    %v480 = vsel %vm479, %v381, %v478
    %vm481 = vcmask 1043459
    %v482 = vsel %vm481, %v400, %v480
    %vm483 = vcmask 1044484
    %v484 = vsel %vm483, %v419, %v482
    %vm485 = vcmask 1045509
    %v486 = vsel %vm485, %v438, %v484
    %vm487 = vcmask 1046534
    %v488 = vsel %vm487, %v457, %v486
    %vm489 = vcmask 1047559
    %v490 = vsel %vm489, %v476, %v488
    %v492 = vadd.f32 %v98, %v490
    %vm493 = vcmask 261120
    %494 = vst.msk [vmem:[#allocation2] sm:$0xff] %vm493, %v492
    %v495 = vld [vmem:[#allocation3] sm:$0xff]
    %496 = vadd.xlane.f32.xlu0 %v65
    %v497 = vpop.xlane.xlu0 %496
    %v498 = vadd.f32 %v495, %v497
    %vm499 = vcmask 7168
    %500 = vst.msk [vmem:[#allocation3] sm:$0xff] %vm499, %v498
    // Predicated region
    $region34: #{tpu_custom_call.1} parent=1 // pred_check
      %p501 = pneg %p57
    $region35: #{tpu_custom_call.1} parent=1 // pred_check_branch
      %503 = sbr.rel (%p501) target = $region37
    $region36: #{tpu_custom_call.1} parent=1 // pred_region
      %v504 = vld [vmem:[#allocation2] sm:$0xff]
      %v505 = vld [vmem:[#allocation9] sm:$0xff]
      %v506 = vld [vmem:[#allocation9 + $0x8] sm:$0xff]
      %v507 = vld [vmem:[#allocation9 + $0x10] sm:$0xff]
      %v508 = vld [vmem:[#allocation9 + $0x18] sm:$0xff]
      %v509 = vld [vmem:[#allocation3] sm:$0xff]
      %v510 = vld [vmem:[%s3] sm:$0x1]
      %512 = vset.pattern.permute.xlu0 0
      %513 = vperm.xlu0 %512, %v509
      %v514 = vpop.permute.xlu0 %513
      %v517 = vlaneseq
      %v518 = vshrl.u32 %v517, 7
      %v519 = vsub.s32 0, %v518
      %v520 = vrot.slane %v510, %v519
      %v522 = vmul.f32 %v514, %v520
      %v524 = vsel %vm493, %v504, 0
      %526 = vmatprep.subr.mxu0 0.0
      %527 = vmatpush1.msra.mxu0 0.0
      %528 = vmatprep.subr.mxu0 0.0
      %529 = vmatpush1.msra.mxu0 0.0
      %530 = vmatprep.subr.mxu0 0.0
      %531 = vmatpush1.msra.mxu0 0.0
      %532 = vmatprep.subr.mxu0 0.0
      %533 = vmatpush1.msra.mxu0 0.0
      %534 = vmatprep.subr.mxu0 0.0
      %535 = vmatpush1.msra.mxu0 0.0
      %536 = vmatprep.subr.mxu0 0.0
      %537 = vmatpush1.msra.mxu0 0.0
      %538 = vmatprep.subr.mxu0 0.0
      %539 = vmatpush1.msra.mxu0 0.0
      %540 = vmatprep.subr.mxu0 0.0
      %541 = vmatpush1.msra.mxu0 0.0
      %542 = vmatprep.subr.mxu0 0.0
      %543 = vmatpush1.msra.mxu0 0.0
      %544 = vmatprep.subr.mxu0 0.0
      %545 = vmatpush1.msra.mxu0 0.0
      %546 = vmatprep.subr.mxu0 0.0
      %547 = vmatpush1.msra.mxu0 0.0
      %548 = vmatprep.subr.mxu0 0.0
      %549 = vmatpush1.msra.mxu0 0.0
      %550 = vmatprep.subr.mxu0 0.0
      %551 = vmatpush1.msra.mxu0 %v508
      %552 = vmatprep.subr.mxu0 0.0
      %553 = vmatpush1.msra.mxu0 %v507
      %554 = vmatprep.subr.mxu0 0.0
      %555 = vmatpush1.msra.mxu0 %v506
      %556 = vmatprep.subr.mxu0 0.0
      %557 = vmatpush1.msra.mxu0 %v505
      %558 = vmatprep.subr.mxu0 0.0
      %559 = vmatpush2.msra.mxu0 0.0
      %560 = vmatprep.subr.mxu0 0.0
      %561 = vmatpush2.msra.mxu0 0.0
      %562 = vmatprep.subr.mxu0 0.0
      %563 = vmatpush2.msra.mxu0 0.0
      %564 = vmatprep.subr.mxu0 0.0
      %565 = vmatpush2.msra.mxu0 0.0
      %566 = vmatprep.subr.mxu0 0.0
      %567 = vmatpush2.msra.mxu0 0.0
      %568 = vmatprep.subr.mxu0 0.0
      %569 = vmatpush2.msra.mxu0 0.0
      %570 = vmatprep.subr.mxu0 0.0
      %571 = vmatpush2.msra.mxu0 0.0
      %572 = vmatprep.subr.mxu0 0.0
      %573 = vmatpush2.msra.mxu0 0.0
      %574 = vmatprep.subr.mxu0 0.0
      %575 = vmatpush2.msra.mxu0 0.0
      %576 = vmatprep.subr.mxu0 0.0
      %577 = vmatpush2.msra.mxu0 0.0
      %578 = vmatprep.subr.mxu0 0.0
      %579 = vmatpush2.msra.mxu0 0.0
      %580 = vmatprep.subr.mxu0 0.0
      %581 = vmatpush2.msra.mxu0 0.0
      %582 = vmatprep.subr.mxu0 0.0
      %583 = vmatpush2.msra.mxu0 0.0
      %584 = vmatprep.subr.mxu0 0.0
      %585 = vmatpush2.msra.mxu0 0.0
      %586 = vmatprep.subr.mxu0 0.0
      %587 = vmatpush2.msra.mxu0 0.0
      %588 = vmatprep.subr.mxu0 0.0
      %589 = vmatpush2.msra.mxu0 0.0
      %590 = vmatprep.mubr.f32.mxu0 0.0
      %591 = vmatmul.mubr.f32.gmra.mxu0 %v524
      %v592 = vpop.f32.mrf.mxu0
      %v593 = vadd.f32 %v522, %v592
      %v594 = vpop.f32.mrf.mxu0
      %595 = vdwg.mxu0
      %v596 = vsel %vm493, %v593, -inf
      %597 = vmax.xlane.f32.xlu0 %v596
      %v598 = vpop.xlane.xlu0 %597
      %v599 = vsub.f32 %v593, %v598
      %v600 = vmul.f32 %v599, 1.442695
      %v601 = vpow.pop %v600
      %v602 = vsel %vm493, %v601, 0.0
      %603 = vadd.xlane.f32.xlu0 %v602
      %v604 = vpop.xlane.xlu0 %603
      %v605 = vrcp.pop %v604
      %v606 = vmul.f32 %v601, %v605
      %607 = vst.msk [vmem:[#allocation10] sm:$0xff] %vm493, %v606
    $region37: #{tpu_custom_call.1} parent=1 // pred_fallthru
      _
    // Predicated region
    $region38: #{tpu_custom_call.1} parent=1 // pred_check
      _
    $region39: #{tpu_custom_call.1} parent=1 // pred_check_branch
      %609 = sbr.rel (0) target = $region41
    $region40: #{tpu_custom_call.1} parent=1 // pred_region
      %s611 = ssub.s32 128, 128
      %612 = vsyncadd [#allocation6], %s611
      %s614 = sshll.u32 [#allocation10], 4
      %s615 = int_to_ptr.vmem [resolvable:$true] %s614
      %617 = dma.vmem_to_hbm [thread:$0]  %s615, 128, %s4, [#allocation6]
    $region41: #{tpu_custom_call.1} parent=1 // pred_fallthru
      _
    // Predicated region
    $region42: #{tpu_custom_call.1} parent=1 // pred_check
      _
    $region43: #{tpu_custom_call.1} parent=1 // pred_check_branch
      %619 = sbr.rel (0) target = $region45
    $region44: #{tpu_custom_call.1} parent=1 // pred_region
      %620 = dma.done [#allocation6], 128
    $region45: #{tpu_custom_call.1} parent=1 // pred_fallthru
      _
    %621 = vsyncpa [#allocation5], 1
    %622 = vsyncpa [#allocation8], 1
    %623 = vsyncpa [#allocation6], 1

</llo_original>
